<compile_context>
chip_gen: v7x
topology: tpu7x:2x2x1
jax: 0.10.0
libtpu: 0.0.40
codegen_flags: <defaults>
</compile_context>

<pallas_src>
import jax
import jax.numpy as jnp
from jax.experimental import pallas as pl
from jax.experimental.pallas import tpu as pltpu

_LANE = 128


def _round_up(a, b):
    return ((a + b - 1) // b) * b


def _supports_single_buffering():
    """Explicit capability check for pl.Buffered / BlockSpec(pipeline_mode=)."""
    if not hasattr(pl, "Buffered"):
        return False
    try:
        pl.BlockSpec((8, 128), lambda i: (0, 0), pipeline_mode=pl.Buffered(1))
    except TypeError:
        return False
    return True


_SINGLE_BUFFER_WP = _supports_single_buffering()


# -----------------------------------------------------------------------------
# Kernel
# -----------------------------------------------------------------------------
def _gated_mlp_kernel(x_ref, wp_ref, wg_ref, wo_ref, o_ref, h_ref, acc_ref):
    """One (row-tile i, hidden-tile j) step of the fused gated MLP."""
    j = pl.program_id(1)
    tn = wg_ref.shape[1]

    @pl.when(j == 0)
    def _():
        # proj: h = x @ Wp -- once per row tile.  Keep a single copy of h in
        # the input dtype (MXU-native operand), f32 accumulation in the dot.
        h32 = jnp.dot(x_ref[...], wp_ref[...],
                      preferred_element_type=jnp.float32)
        h_ref[...] = h32.astype(h_ref.dtype)
        acc_ref[...] = jnp.zeros_like(acc_ref)

    # gate, hidden tile j: z_j = h @ Wg[:, j*tn:(j+1)*tn]
    z = jnp.dot(h_ref[...], wg_ref[...], preferred_element_type=jnp.float32)
    # sigmoid via tanh: EUP transcendental, no f32 divide on the VALU.
    g = 0.5 * jnp.tanh(0.5 * z) + 0.5

    # gated hidden columns of this tile, then their o_proj contribution.
    col = pl.multiple_of(j * tn, tn)
    h_j = h_ref[:, pl.ds(col, tn)]
    gated = (h_j.astype(jnp.float32) * g).astype(wo_ref.dtype)
    acc_ref[...] += jnp.dot(gated, wo_ref[...],
                            preferred_element_type=jnp.float32)
    # TODO(synk): optionally interleave sigmoid of tile j+1 under the Wo matmul
    # of tile j (fori_loop chunking) to fully hide the EUP latency.

    @pl.when(j == pl.num_programs(1) - 1)
    def _():
        o_ref[...] = acc_ref[...].astype(o_ref.dtype)


# -----------------------------------------------------------------------------
# Generation-aware sizing
# -----------------------------------------------------------------------------
def _vmem_limit_bytes():
    cap = None
    if hasattr(pltpu, "get_tpu_info"):
        try:
            cap = int(pltpu.get_tpu_info().vmem_capacity_bytes)
        except Exception:
            cap = None
    if cap is None:
        return 48 * 1024 * 1024                    # safe on every generation
    if cap <= 64 * 1024 * 1024:                    # v7x: 64 MiB per TensorCore
        return 52 * 1024 * 1024                    # headroom for Mosaic scratch
    # v5e / v6e: 128 MiB physical -> raise well past the scoped default.
    return min(cap - 16 * 1024 * 1024, 112 * 1024 * 1024)


def _pick_tiles(M, in_dim, n_embd_p, x_size, w_size, out_size, vmem_limit,
                tm_req):
    """Pick (tm, tn): 128-granular tiles whose footprint fits the VMEM budget."""
    sub = 8 if x_size >= 4 else 16
    tm_cap = _round_up(M, sub)

    if n_embd_p % _LANE != 0:
        tn_cands = [n_embd_p]                       # single hidden step
    else:
        tn_cands = [c for c in (512, 256, 128)
                    if c <= n_embd_p and n_embd_p % c == 0] or [n_embd_p]

    def est(tm, tn):
        wp_bufs = 1 if _SINGLE_BUFFER_WP else 2
        return (2 * tm * in_dim * x_size             # x tile (double buffered)
                + wp_bufs * in_dim * n_embd_p * w_size   # resident Wp
                + 2 * n_embd_p * tn * w_size         # Wg tile (double buffered)
                + 2 * tn * n_embd_p * w_size         # Wo tile (double buffered)
                + 2 * tm * n_embd_p * out_size       # out tile (double buffered)
                + tm * n_embd_p * x_size             # h scratch
                + tm * n_embd_p * 4)                 # f32 accumulator scratch

    budget = int(0.9 * vmem_limit)
    tm_cands = []
    for c in (tm_req, 256, 128):
        c = max(sub, min(_round_up(c, sub), tm_cap))
        if c not in tm_cands:
            tm_cands.append(c)

    for tm in tm_cands:
        for tn in tn_cands:
            if est(tm, tn) <= budget:
                return tm, tn
    return tm_cands[-1], tn_cands[-1]


# -----------------------------------------------------------------------------
# pallas_call builder + wrapper
# -----------------------------------------------------------------------------
def _make_call(M, in_dim, n_embd_p, x_dtype, w_dtype, out_dtype, tm, tn,
               vmem_limit):
    grid = (pl.cdiv(M, tm), n_embd_p // tn)

    wp_kwargs = (
        {"pipeline_mode": pl.Buffered(1)} if _SINGLE_BUFFER_WP else {})

    x_size = jnp.dtype(x_dtype).itemsize
    w_size = jnp.dtype(w_dtype).itemsize
    out_size = jnp.dtype(out_dtype).itemsize
    flops = 2 * M * n_embd_p * (in_dim + 2 * n_embd_p) + 4 * M * n_embd_p
    bytes_accessed = (M * in_dim * x_size
                      + (in_dim * n_embd_p + 2 * n_embd_p * n_embd_p) * w_size
                      + M * n_embd_p * out_size)
    cost = pl.CostEstimate(flops=flops, transcendentals=M * n_embd_p,
                           bytes_accessed=bytes_accessed)

    return pl.pallas_call(
        _gated_mlp_kernel,
        out_shape=jax.ShapeDtypeStruct((M, n_embd_p), out_dtype),
        grid_spec=pltpu.PrefetchScalarGridSpec(
            num_scalar_prefetch=0,
            grid=grid,
            in_specs=[
                # x row tile: constant across the hidden axis -> no re-fetch.
                pl.BlockSpec((tm, in_dim), lambda i, j: (i, 0)),
                # Wp: grid-invariant; single VMEM buffer when supported.
                pl.BlockSpec((in_dim, n_embd_p), lambda i, j: (0, 0),
                             **wp_kwargs),
                # Wg columns / Wo rows of hidden tile j: default double
                # buffering so the next tile's DMA hides under the MXU.
                pl.BlockSpec((n_embd_p, tn), lambda i, j: (0, j)),
                pl.BlockSpec((tn, n_embd_p), lambda i, j: (j, 0)),
            ],
            out_specs=pl.BlockSpec((tm, n_embd_p), lambda i, j: (i, 0)),
            scratch_shapes=[
                pltpu.VMEM((tm, n_embd_p), x_dtype),      # h = x @ Wp
                pltpu.VMEM((tm, n_embd_p), jnp.float32),  # output accumulator
            ],
        ),
        compiler_params=pltpu.CompilerParams(
            dimension_semantics=("parallel", "arbitrary"),
            vmem_limit_bytes=vmem_limit,
        ),
        cost_estimate=cost,
    )


def prepare_weights(w_proj, w_gate, w_o):
    """Transpose PyTorch-layout (out, in) weights to (in, out) and zero-pad the
    hidden/output dim to a lane-dense multiple of 128 ONCE, outside the
    per-forward-call path.  Returns (wp_t, wg_t, wo_t, n_embd)."""
    n_embd = w_proj.shape[0]
    n_embd_p = _round_up(n_embd, _LANE)
    pad = n_embd_p - n_embd

    wp_t, wg_t, wo_t = w_proj.T, w_gate.T, w_o.T
    if pad:
        # Zero padding keeps the math exact: padded h columns are 0, padded
        # gate columns (sigmoid(0)=0.5) multiply those zero columns, and
        # padded output columns are zero and sliced off by the wrapper.
        wp_t = jnp.pad(wp_t, ((0, 0), (0, pad)))
        wg_t = jnp.pad(wg_t, ((0, pad), (0, pad)))
        wo_t = jnp.pad(wo_t, ((0, pad), (0, pad)))
    return wp_t, wg_t, wo_t, n_embd


def mlp_with_context_gating(x, wp_t, wg_t, wo_t, n_embd=None, *, tm=512):
    """x: (batch, seq, in_dim); wp_t/wg_t/wo_t are (in, out)-layout weights from
    prepare_weights() (hidden dim possibly padded to a multiple of 128);
    n_embd is the un-padded output width."""
    batch, seq, in_dim = x.shape
    n_embd_p = wp_t.shape[1]
    if n_embd is None:
        n_embd = n_embd_p
    M = batch * seq
    x2d = x.reshape(M, in_dim)
    out_dtype = x2d.dtype

    vmem_limit = _vmem_limit_bytes()
    tm_eff, tn = _pick_tiles(
        M, in_dim, n_embd_p,
        jnp.dtype(x2d.dtype).itemsize,
        jnp.dtype(wp_t.dtype).itemsize,
        jnp.dtype(out_dtype).itemsize,
        vmem_limit, tm)

    call = _make_call(M, in_dim, n_embd_p, x2d.dtype, wp_t.dtype, out_dtype,
                      tm_eff, tn, vmem_limit)
    out2d = call(x2d, wp_t, wg_t, wo_t)
    if n_embd != n_embd_p:
        out2d = out2d[:, :n_embd]
    return out2d.reshape(batch, seq, n_embd)


# -----------------------------------------------------------------------------
# Reference + test
# -----------------------------------------------------------------------------
def _reference(x, w_proj, w_gate, w_o):
    h = jnp.einsum("bsd,ed->bse", x, w_proj)
    g = jax.nn.sigmoid(jnp.einsum("bse,fe->bsf", h, w_gate))
    return jnp.einsum("bse,fe->bsf", h * g, w_o)


if __name__ == "__main__":
    batch, seq, in_dim, n_embd = 2, 8, 32, 32

    key = jax.random.PRNGKey(0)
    kx, kp, kg, ko = jax.random.split(key, 4)

    x = jax.random.normal(kx, (batch, seq, in_dim), dtype=jnp.float32)
    # Deterministic synthetic weights (PyTorch nn.Linear layout: (out, in)).
    w_proj = jax.random.normal(kp, (n_embd, in_dim), dtype=jnp.float32) * 0.05
    w_gate = jax.random.normal(kg, (n_embd, n_embd), dtype=jnp.float32) * 0.05
    w_o = jax.random.normal(ko, (n_embd, n_embd), dtype=jnp.float32) * 0.05

    # Transpose + lane-pad once, outside the call path.
    wp_t, wg_t, wo_t, n_out = prepare_weights(w_proj, w_gate, w_o)

    out = mlp_with_context_gating(x, wp_t, wg_t, wo_t, n_out)
    out = jax.block_until_ready(out)

    ref = _reference(x, w_proj, w_gate, w_o)
    assert out.shape == (batch, seq, n_embd)
    assert jnp.allclose(out, ref, atol=1e-5, rtol=1e-5), float(
        jnp.max(jnp.abs(out - ref)))

    print("KERNEL_OK")
</pallas_src>

<mosaic_0001>
module attributes {stable_mosaic.version = 11 : i64} {
  func.func @_gated_mlp_kernel(%arg0: i32, %arg1: i32, %arg2: memref<16x32xf32, #tpu.memory_space<vmem>>, %arg3: memref<32x128xf32, #tpu.memory_space<vmem>>, %arg4: memref<128x128xf32, #tpu.memory_space<vmem>>, %arg5: memref<128x128xf32, #tpu.memory_space<vmem>>, %arg6: memref<16x128xf32, #tpu.memory_space<vmem>>, %arg7: memref<16x128xf32, #tpu.memory_space<vmem>>, %arg8: memref<16x128xf32, #tpu.memory_space<vmem>>) attributes {dimension_semantics = [#tpu.dimension_semantics<parallel>, #tpu.dimension_semantics<arbitrary>], iteration_bounds = array<i64: 1, 1>, scalar_prefetch = 0 : i64, scratch_operands = 2 : i64, tpu.core_type = #tpu.core_type<tc>, window_params = [{transform_indices = @transform_0, window_bounds = array<i64: 16, 32>}, {pipeline_mode = #tpu.pipeline_mode<synchronous>, transform_indices = @transform_1, window_bounds = array<i64: 32, 128>}, {transform_indices = @transform_2, window_bounds = array<i64: 128, 128>}, {transform_indices = @transform_3, window_bounds = array<i64: 128, 128>}, {transform_indices = @transform_4, window_bounds = array<i64: 16, 128>}]} {
    %c0_i32 = arith.constant 0 : i32
    %0 = arith.cmpi eq, %arg1, %c0_i32 : i32
    %1 = arith.extui %0 : i1 to i32
    %c0_i32_0 = arith.constant 0 : i32
    %2 = arith.cmpi ne, %1, %c0_i32_0 : i32
    scf.if %2 {
      %c0_17 = arith.constant 0 : index
      %c0_18 = arith.constant 0 : index
      %26 = vector.load %arg2[%c0_17, %c0_18] : memref<16x32xf32, #tpu.memory_space<vmem>>, vector<16x32xf32>
      %c0_19 = arith.constant 0 : index
      %c0_20 = arith.constant 0 : index
      %27 = vector.load %arg3[%c0_19, %c0_20] : memref<32x128xf32, #tpu.memory_space<vmem>>, vector<32x128xf32>
      %cst_21 = arith.constant dense<0.000000e+00> : vector<16x128xf32>
      %28 = tpu.matmul %26, %27, %cst_21 {dimension_numbers = #tpu.dot_dimension_numbers<[1], [0], [0], [1], [0, 0, 1, 1], [], []>} : vector<16x32xf32>, vector<32x128xf32>, vector<16x128xf32> -> vector<16x128xf32>
      %c0_22 = arith.constant 0 : index
      %c0_23 = arith.constant 0 : index
      %29 = vector.load %arg7[%c0_22, %c0_23] : memref<16x128xf32, #tpu.memory_space<vmem>>, vector<16x128xf32>
      tpu.vector_store %arg7[%c0_22, %c0_23], %28 {strides = array<i32>} : memref<16x128xf32, #tpu.memory_space<vmem>>, vector<16x128xf32>,
      %cst_24 = arith.constant 0.000000e+00 : f32
      %30 = vector.broadcast %cst_24 : f32 to vector<16x128xf32>
      %c0_25 = arith.constant 0 : index
      %c0_26 = arith.constant 0 : index
      %31 = vector.load %arg8[%c0_25, %c0_26] : memref<16x128xf32, #tpu.memory_space<vmem>>, vector<16x128xf32>
      tpu.vector_store %arg8[%c0_25, %c0_26], %30 {strides = array<i32>} : memref<16x128xf32, #tpu.memory_space<vmem>>, vector<16x128xf32>,
    } else {
    }
    %c0 = arith.constant 0 : index
    %c0_1 = arith.constant 0 : index
    %3 = vector.load %arg7[%c0, %c0_1] : memref<16x128xf32, #tpu.memory_space<vmem>>, vector<16x128xf32>
    %c0_2 = arith.constant 0 : index
    %c0_3 = arith.constant 0 : index
    %4 = vector.load %arg4[%c0_2, %c0_3] : memref<128x128xf32, #tpu.memory_space<vmem>>, vector<128x128xf32>
    %cst = arith.constant dense<0.000000e+00> : vector<16x128xf32>
    %5 = tpu.matmul %3, %4, %cst {dimension_numbers = #tpu.dot_dimension_numbers<[1], [0], [0], [1], [0, 0, 1, 1], [], []>} : vector<16x128xf32>, vector<128x128xf32>, vector<16x128xf32> -> vector<16x128xf32>
    %cst_4 = arith.constant 5.000000e-01 : f32
    %6 = vector.broadcast %cst_4 : f32 to vector<16x128xf32>
    %7 = arith.mulf %6, %5 : vector<16x128xf32>
    %8 = math.tanh %7 : vector<16x128xf32>
    %cst_5 = arith.constant 5.000000e-01 : f32
    %9 = vector.broadcast %cst_5 : f32 to vector<16x128xf32>
    %10 = arith.mulf %9, %8 : vector<16x128xf32>
    %cst_6 = arith.constant 5.000000e-01 : f32
    %11 = vector.broadcast %cst_6 : f32 to vector<16x128xf32>
    %12 = arith.addf %10, %11 : vector<16x128xf32>
    %c128_i32 = arith.constant 128 : i32
    %13 = arith.muli %arg1, %c128_i32 : i32
    %14 = tpu.assume_multiple %13, 128 : i32
    %c0_7 = arith.constant 0 : index
    %15 = arith.index_cast %14 : i32 to index
    %16 = vector.load %arg7[%c0_7, %15] : memref<16x128xf32, #tpu.memory_space<vmem>>, vector<16x128xf32>
    %17 = arith.mulf %16, %12 : vector<16x128xf32>
    %c0_8 = arith.constant 0 : index
    %c0_9 = arith.constant 0 : index
    %18 = vector.load %arg8[%c0_8, %c0_9] : memref<16x128xf32, #tpu.memory_space<vmem>>, vector<16x128xf32>
    %c0_10 = arith.constant 0 : index
    %c0_11 = arith.constant 0 : index
    %19 = vector.load %arg5[%c0_10, %c0_11] : memref<128x128xf32, #tpu.memory_space<vmem>>, vector<128x128xf32>
    %cst_12 = arith.constant dense<0.000000e+00> : vector<16x128xf32>
    %20 = tpu.matmul %17, %19, %cst_12 {dimension_numbers = #tpu.dot_dimension_numbers<[1], [0], [0], [1], [0, 0, 1, 1], [], []>} : vector<16x128xf32>, vector<128x128xf32>, vector<16x128xf32> -> vector<16x128xf32>
    %21 = arith.addf %18, %20 : vector<16x128xf32>
    %c0_13 = arith.constant 0 : index
    %c0_14 = arith.constant 0 : index
    %22 = vector.load %arg8[%c0_13, %c0_14] : memref<16x128xf32, #tpu.memory_space<vmem>>, vector<16x128xf32>
    tpu.vector_store %arg8[%c0_13, %c0_14], %21 {strides = array<i32>} : memref<16x128xf32, #tpu.memory_space<vmem>>, vector<16x128xf32>,
    %c0_i32_15 = arith.constant 0 : i32
    %23 = arith.cmpi eq, %arg1, %c0_i32_15 : i32
    %24 = arith.extui %23 : i1 to i32
    %c0_i32_16 = arith.constant 0 : i32
    %25 = arith.cmpi ne, %24, %c0_i32_16 : i32
    scf.if %25 {
      %c0_17 = arith.constant 0 : index
      %c0_18 = arith.constant 0 : index
      %26 = vector.load %arg8[%c0_17, %c0_18] : memref<16x128xf32, #tpu.memory_space<vmem>>, vector<16x128xf32>
      %c0_19 = arith.constant 0 : index
      %c0_20 = arith.constant 0 : index
      %27 = vector.load %arg6[%c0_19, %c0_20] : memref<16x128xf32, #tpu.memory_space<vmem>>, vector<16x128xf32>
      tpu.vector_store %arg6[%c0_19, %c0_20], %26 {strides = array<i32>} : memref<16x128xf32, #tpu.memory_space<vmem>>, vector<16x128xf32>,
    } else {
    }
    return
  }
  func.func @transform_0(%arg0: i32, %arg1: i32) -> (i32, i32) {
    %c0_i32 = arith.constant 0 : i32
    %c0_i32_0 = arith.constant 0 : i32
    return %arg0, %c0_i32 : i32, i32
  }
  func.func @transform_1(%arg0: i32, %arg1: i32) -> (i32, i32) {
    %c0_i32 = arith.constant 0 : i32
    %c0_i32_0 = arith.constant 0 : i32
    %c0_i32_1 = arith.constant 0 : i32
    return %c0_i32, %c0_i32_0 : i32, i32
  }
  func.func @transform_2(%arg0: i32, %arg1: i32) -> (i32, i32) {
    %c0_i32 = arith.constant 0 : i32
    %c0_i32_0 = arith.constant 0 : i32
    return %c0_i32, %arg1 : i32, i32
  }
  func.func @transform_3(%arg0: i32, %arg1: i32) -> (i32, i32) {
    %c0_i32 = arith.constant 0 : i32
    %c0_i32_0 = arith.constant 0 : i32
    return %arg1, %c0_i32 : i32, i32
  }
  func.func @transform_4(%arg0: i32, %arg1: i32) -> (i32, i32) {
    %c0_i32 = arith.constant 0 : i32
    %c0_i32_0 = arith.constant 0 : i32
    return %arg0, %c0_i32 : i32, i32
  }
}

</mosaic_0001>

<llo_original>
// kernel: tpu_custom_call.1
$region0: #{tpu_custom_call.1}
  #allocation0 [shape = 'u32[]', space=smem, size = 0x4, offset = 0x4, fixed_abs, tag = 'smem constant byte address 0x4 - core index']
  #allocation1 [shape = 'u32[144,128]{1,0:T(1,128)}', space=vmem, size = 0x12000, scoped, tag = 'internal scratch']
  #allocation2 [shape = 'f32[16,128]{1,0:T(8,128)}', space=vmem, size = 0x2000, scoped, tag = 'scratch operand']
  #allocation3 [shape = 'f32[16,128]{1,0:T(8,128)}', space=vmem, size = 0x2000, scoped, tag = 'scratch operand']
  %s0 = inlined_call_operand.hbm [shape: f32[16,32], index: 0, kind: input, shape index: {}]
  %s1 = inlined_call_operand.hbm [shape: f32[32,128], index: 1, kind: input, shape index: {}]
  %s2 = inlined_call_operand.hbm [shape: f32[128,128], index: 2, kind: input, shape index: {}]
  %s3 = inlined_call_operand.hbm [shape: f32[128,128], index: 3, kind: input, shape index: {}]
  %s4 = inlined_call_operand.hbm [shape: f32[16,128], index: 4, kind: output, shape index: {}]
  %s5 = sld [smem:[#allocation0]]
  $region50: #{tpu_custom_call.1} parent=0
    _
  %s7 = ssub.s32 1, %s5
  %s8 = scalar_select 0, %s7, %s5
  $region1: #{tpu_custom_call.1} parent=0
    #allocation4 [shape = 'u8[8192]{0}', space=vmem, size = 0x2000, scoped, tag = 'input window, operand 0, single buffered']
    #allocation5 [shape = 's32[1]{0}', space=sflag, size = 0x4, scoped, tag = 'scoped memory for tpu_custom_call.1']
    #allocation6 [shape = 's32[1]{0}', space=sflag, size = 0x4, scoped, tag = 'scoped memory for tpu_custom_call.1']
    #allocation7 [shape = 'u8[16384]{0}', space=vmem, size = 0x4000, scoped, tag = 'input window, operand 1, single buffered']
    #allocation8 [shape = 's32[1]{0}', space=sflag, size = 0x4, scoped, tag = 'scoped memory for tpu_custom_call.1']
    #allocation9 [shape = 'u8[65536]{0}', space=vmem, size = 0x10000, scoped, tag = 'input window, operand 2, single buffered']
    #allocation10 [shape = 'u8[65536]{0}', space=vmem, size = 0x10000, scoped, tag = 'input window, operand 3, single buffered']
    #allocation11 [shape = 's32[1]{0}', space=sflag, size = 0x4, scoped, tag = 'scoped memory for tpu_custom_call.1']
    #allocation12 [shape = 'u8[8192]{0}', space=vmem, size = 0x2000, scoped, tag = 'output window, operand 0, single buffered']
    %9 = vsyncpa [#allocation5], 0
    %10 = vsyncpa [#allocation8], 0
    %11 = vsyncpa [#allocation11], 0
    %12 = vsyncpa [#allocation6], 0
    // Predicated region
    $region2: #{tpu_custom_call.1} parent=1 // pred_check
      _
    $region3: #{tpu_custom_call.1} parent=1 // pred_check_branch
      %14 = sbr.rel (0) target = $region5
    $region4: #{tpu_custom_call.1} parent=1 // pred_region
      %s16 = ssub.s32 256, 256
      %17 = vsyncadd [#allocation5], %s16
      %s18 = sshll.u32 [#allocation4], 4
      %s19 = int_to_ptr.vmem [resolvable:$true] %s18
      %24 = dma.hbm_to_vmem [thread:$0]  %s0, 256, %s19, [#allocation5], 128, 128, 8
    $region5: #{tpu_custom_call.1} parent=1 // pred_fallthru
      _
    // Predicated region
    $region6: #{tpu_custom_call.1} parent=1 // pred_check
      _
    $region7: #{tpu_custom_call.1} parent=1 // pred_check_branch
      %26 = sbr.rel (0) target = $region9
    $region8: #{tpu_custom_call.1} parent=1 // pred_region
      %s28 = ssub.s32 512, 512
      %29 = vsyncadd [#allocation8], %s28
      %s30 = sshll.u32 [#allocation7], 4
      %s31 = int_to_ptr.vmem [resolvable:$true] %s30
      %36 = dma.hbm_to_vmem [thread:$0]  %s1, 512, %s31, [#allocation8], 128, 128, 8
    $region9: #{tpu_custom_call.1} parent=1 // pred_fallthru
      _
    // Predicated region
    $region10: #{tpu_custom_call.1} parent=1 // pred_check
      _
    $region11: #{tpu_custom_call.1} parent=1 // pred_check_branch
      %38 = sbr.rel (0) target = $region13
    $region12: #{tpu_custom_call.1} parent=1 // pred_region
      %s40 = ssub.s32 2048, 2048
      %41 = vsyncadd [#allocation8], %s40
      %s42 = sshll.u32 [#allocation9], 4
      %s43 = int_to_ptr.vmem [resolvable:$true] %s42
      %48 = dma.hbm_to_vmem [thread:$0]  %s2, 2048, %s43, [#allocation8], 128, 128, 8
    $region13: #{tpu_custom_call.1} parent=1 // pred_fallthru
      _
    // Predicated region
    $region14: #{tpu_custom_call.1} parent=1 // pred_check
      _
    $region15: #{tpu_custom_call.1} parent=1 // pred_check_branch
      %50 = sbr.rel (0) target = $region17
    $region16: #{tpu_custom_call.1} parent=1 // pred_region
      %s52 = ssub.s32 2048, 2048
      %53 = vsyncadd [#allocation11], %s52
      %s54 = sshll.u32 [#allocation10], 4
      %s55 = int_to_ptr.vmem [resolvable:$true] %s54
      %60 = dma.hbm_to_vmem [thread:$0]  %s3, 2048, %s55, [#allocation11], 128, 128, 8
    $region17: #{tpu_custom_call.1} parent=1 // pred_fallthru
      _
    // Predicated region
    $region18: #{tpu_custom_call.1} parent=1 // pred_check
      _
    $region19: #{tpu_custom_call.1} parent=1 // pred_check_branch
      %62 = sbr.rel (0) target = $region21
    $region20: #{tpu_custom_call.1} parent=1 // pred_region
      %63 = dma.done [#allocation5], 256
    $region21: #{tpu_custom_call.1} parent=1 // pred_fallthru
      _
    // Predicated region
    $region22: #{tpu_custom_call.1} parent=1 // pred_check
      _
    $region23: #{tpu_custom_call.1} parent=1 // pred_check_branch
      %65 = sbr.rel (0) target = $region25
    $region24: #{tpu_custom_call.1} parent=1 // pred_region
      %66 = dma.done [#allocation8], 512
    $region25: #{tpu_custom_call.1} parent=1 // pred_fallthru
      _
    // Predicated region
    $region26: #{tpu_custom_call.1} parent=1 // pred_check
      _
    $region27: #{tpu_custom_call.1} parent=1 // pred_check_branch
      %68 = sbr.rel (0) target = $region29
    $region28: #{tpu_custom_call.1} parent=1 // pred_region
      %69 = dma.done [#allocation8], 2048
    $region29: #{tpu_custom_call.1} parent=1 // pred_fallthru
      _
    // Predicated region
    $region30: #{tpu_custom_call.1} parent=1 // pred_check
      _
    $region31: #{tpu_custom_call.1} parent=1 // pred_check_branch
      %71 = sbr.rel (0) target = $region33
    $region32: #{tpu_custom_call.1} parent=1 // pred_region
      %72 = dma.done [#allocation11], 2048
    $region33: #{tpu_custom_call.1} parent=1 // pred_fallthru
      _
    %p73 = scmp.eq.s32.totalorder 0, 0
    // Predicated region
    $region34: #{tpu_custom_call.1} parent=1 // pred_check
      %p74 = pneg %p73
    $region35: #{tpu_custom_call.1} parent=1 // pred_check_branch
      %76 = sbr.rel (%p74) target = $region37
    $region36: #{tpu_custom_call.1} parent=1 // pred_region
      %v77 = vld [vmem:[#allocation4] sm:$0xff]
      %v78 = vld [vmem:[#allocation4 + $0x8] sm:$0xff]
      %v79 = vld [vmem:[#allocation7] sm:$0xff]
      %v80 = vld [vmem:[#allocation7 + $0x8] sm:$0xff]
      %v81 = vld [vmem:[#allocation7 + $0x10] sm:$0xff]
      %v82 = vld [vmem:[#allocation7 + $0x18] sm:$0xff]
      %vm83 = vcmask 261120
      %v85 = vsel %vm83, %v77, 0
      %v88 = vsel %vm83, %v78, 0
      %90 = vmatprep.subr.mxu0 0.0
      %91 = vmatpush1.msra.mxu0 %v79
      %92 = vmatprep.subr.mxu0 0.0
      %93 = vmatpush1.msra.mxu0 %v80
      %94 = vmatprep.subr.mxu0 0.0
      %95 = vmatpush1.msra.mxu0 %v81
      %96 = vmatprep.subr.mxu0 0.0
      %97 = vmatpush1.msra.mxu0 %v82
      %98 = vmatprep.subr.mxu0 0.0
      %99 = vmatpush1.msra.mxu0 0.0
      %100 = vmatprep.subr.mxu0 0.0
      %101 = vmatpush1.msra.mxu0 0.0
      %102 = vmatprep.subr.mxu0 0.0
      %103 = vmatpush1.msra.mxu0 0.0
      %104 = vmatprep.subr.mxu0 0.0
      %105 = vmatpush1.msra.mxu0 0.0
      %106 = vmatprep.subr.mxu0 0.0
      %107 = vmatpush1.msra.mxu0 0.0
      %108 = vmatprep.subr.mxu0 0.0
      %109 = vmatpush1.msra.mxu0 0.0
      %110 = vmatprep.subr.mxu0 0.0
      %111 = vmatpush1.msra.mxu0 0.0
      %112 = vmatprep.subr.mxu0 0.0
      %113 = vmatpush1.msra.mxu0 0.0
      %114 = vmatprep.subr.mxu0 0.0
      %115 = vmatpush1.msra.mxu0 0.0
      %116 = vmatprep.subr.mxu0 0.0
      %117 = vmatpush1.msra.mxu0 0.0
      %118 = vmatprep.subr.mxu0 0.0
      %119 = vmatpush1.msra.mxu0 0.0
      %120 = vmatprep.subr.mxu0 0.0
      %121 = vmatpush1.msra.mxu0 0.0
      %122 = vmatprep.subr.mxu0 0.0
      %123 = vmatpush1.msra.mxu0 0.0
      %124 = vmatprep.subr.mxu0 0.0
      %125 = vmatpush1.msra.mxu0 0.0
      %126 = vmatprep.subr.mxu0 0.0
      %127 = vmatpush1.msra.mxu0 0.0
      %128 = vmatprep.subr.mxu0 0.0
      %129 = vmatpush1.msra.mxu0 0.0
      %130 = vmatprep.subr.mxu0 0.0
      %131 = vmatpush1.msra.mxu0 0.0
      %132 = vmatprep.subr.mxu0 0.0
      %133 = vmatpush1.msra.mxu0 0.0
      %134 = vmatprep.subr.mxu0 0.0
      %135 = vmatpush1.msra.mxu0 0.0
      %136 = vmatprep.subr.mxu0 0.0
      %137 = vmatpush1.msra.mxu0 0.0
      %138 = vmatprep.subr.mxu0 0.0
      %139 = vmatpush1.msra.mxu0 0.0
      %140 = vmatprep.subr.mxu0 0.0
      %141 = vmatpush1.msra.mxu0 0.0
      %142 = vmatprep.subr.mxu0 0.0
      %143 = vmatpush1.msra.mxu0 0.0
      %144 = vmatprep.subr.mxu0 0.0
      %145 = vmatpush1.msra.mxu0 0.0
      %146 = vmatprep.subr.mxu0 0.0
      %147 = vmatpush1.msra.mxu0 0.0
      %148 = vmatprep.subr.mxu0 0.0
      %149 = vmatpush1.msra.mxu0 0.0
      %150 = vmatprep.subr.mxu0 0.0
      %151 = vmatpush1.msra.mxu0 0.0
      %152 = vmatprep.subr.mxu0 0.0
      %153 = vmatpush1.msra.mxu0 0.0
      %154 = vmatprep.mubr.f32.mxu0 0.0
      %155 = vmatmul.mubr.f32.gmra.mrb[0].mxu0 %v85
      %v156 = vpop.f32.mrb[0].mxu0
      %v157 = vadd.f32 0.0, %v156
      %v158 = vpop.f32.mrb[0].mxu0
      %159 = vmatprep.mubr.f32.mxu0 0.0
      %160 = vmatmul.mubr.f32.gmra.mrb[0].mxu0 %v88
      %v161 = vpop.f32.mrb[0].mxu0
      %v162 = vadd.f32 0.0, %v161
      %v163 = vpop.f32.mrb[0].mxu0
      %164 = vdwg.mxu0
      %165 = vst [vmem:[#allocation2] sm:$0xff] %v157
      %166 = vst [vmem:[#allocation2 + $0x8] sm:$0xff] %v162
      %167 = vst [vmem:[#allocation3] sm:$0xff] 0.0
      %168 = vst [vmem:[#allocation3 + $0x8] sm:$0xff] 0.0
    $region37: #{tpu_custom_call.1} parent=1 // pred_fallthru
      _
    %v169 = vld [vmem:[#allocation2] sm:$0xff]
    %v170 = vld [vmem:[#allocation2 + $0x8] sm:$0xff]
    %v171 = vld [vmem:[#allocation9] sm:$0xff]
    %v172 = vld [vmem:[#allocation9 + $0x8] sm:$0xff]
    %v173 = vld [vmem:[#allocation9 + $0x10] sm:$0xff]
    %v174 = vld [vmem:[#allocation9 + $0x18] sm:$0xff]
    %v175 = vld [vmem:[#allocation9 + $0x20] sm:$0xff]
    %v176 = vld [vmem:[#allocation9 + $0x28] sm:$0xff]
    %v177 = vld [vmem:[#allocation9 + $0x30] sm:$0xff]
    %v178 = vld [vmem:[#allocation9 + $0x38] sm:$0xff]
    %v179 = vld [vmem:[#allocation9 + $0x40] sm:$0xff]
    %v180 = vld [vmem:[#allocation9 + $0x48] sm:$0xff]
    %v181 = vld [vmem:[#allocation9 + $0x50] sm:$0xff]
    %v182 = vld [vmem:[#allocation9 + $0x58] sm:$0xff]
    %v183 = vld [vmem:[#allocation9 + $0x60] sm:$0xff]
    %v184 = vld [vmem:[#allocation9 + $0x68] sm:$0xff]
    %v185 = vld [vmem:[#allocation9 + $0x70] sm:$0xff]
    %v186 = vld [vmem:[#allocation9 + $0x78] sm:$0xff]
    %187 = vmatprep.subr.mxu0 0.0
    %188 = vmatpush1.msra.mxu0 %v171
    %189 = vmatprep.subr.mxu0 0.0
    %190 = vmatpush1.msra.mxu0 %v172
    %191 = vmatprep.subr.mxu0 0.0
    %192 = vmatpush1.msra.mxu0 %v173
    %193 = vmatprep.subr.mxu0 0.0
    %194 = vmatpush1.msra.mxu0 %v174
    %195 = vmatprep.subr.mxu0 0.0
    %196 = vmatpush1.msra.mxu0 %v175
    %197 = vmatprep.subr.mxu0 0.0
    %198 = vmatpush1.msra.mxu0 %v176
    %199 = vmatprep.subr.mxu0 0.0
    %200 = vmatpush1.msra.mxu0 %v177
    %201 = vmatprep.subr.mxu0 0.0
    %202 = vmatpush1.msra.mxu0 %v178
    %203 = vmatprep.subr.mxu0 0.0
    %204 = vmatpush1.msra.mxu0 %v179
    %205 = vmatprep.subr.mxu0 0.0
    %206 = vmatpush1.msra.mxu0 %v180
    %207 = vmatprep.subr.mxu0 0.0
    %208 = vmatpush1.msra.mxu0 %v181
    %209 = vmatprep.subr.mxu0 0.0
    %210 = vmatpush1.msra.mxu0 %v182
    %211 = vmatprep.subr.mxu0 0.0
    %212 = vmatpush1.msra.mxu0 %v183
    %213 = vmatprep.subr.mxu0 0.0
    %214 = vmatpush1.msra.mxu0 %v184
    %215 = vmatprep.subr.mxu0 0.0
    %216 = vmatpush1.msra.mxu0 %v185
    %217 = vmatprep.subr.mxu0 0.0
    %218 = vmatpush1.msra.mxu0 %v186
    %219 = vmatprep.subr.mxu0 0.0
    %220 = vmatpush1.msra.mxu0 0.0
    %221 = vmatprep.subr.mxu0 0.0
    %222 = vmatpush1.msra.mxu0 0.0
    %223 = vmatprep.subr.mxu0 0.0
    %224 = vmatpush1.msra.mxu0 0.0
    %225 = vmatprep.subr.mxu0 0.0
    %226 = vmatpush1.msra.mxu0 0.0
    %227 = vmatprep.subr.mxu0 0.0
    %228 = vmatpush1.msra.mxu0 0.0
    %229 = vmatprep.subr.mxu0 0.0
    %230 = vmatpush1.msra.mxu0 0.0
    %231 = vmatprep.subr.mxu0 0.0
    %232 = vmatpush1.msra.mxu0 0.0
    %233 = vmatprep.subr.mxu0 0.0
    %234 = vmatpush1.msra.mxu0 0.0
    %235 = vmatprep.subr.mxu0 0.0
    %236 = vmatpush1.msra.mxu0 0.0
    %237 = vmatprep.subr.mxu0 0.0
    %238 = vmatpush1.msra.mxu0 0.0
    %239 = vmatprep.subr.mxu0 0.0
    %240 = vmatpush1.msra.mxu0 0.0
    %241 = vmatprep.subr.mxu0 0.0
    %242 = vmatpush1.msra.mxu0 0.0
    %243 = vmatprep.subr.mxu0 0.0
    %244 = vmatpush1.msra.mxu0 0.0
    %245 = vmatprep.subr.mxu0 0.0
    %246 = vmatpush1.msra.mxu0 0.0
    %247 = vmatprep.subr.mxu0 0.0
    %248 = vmatpush1.msra.mxu0 0.0
    %249 = vmatprep.subr.mxu0 0.0
    %250 = vmatpush1.msra.mxu0 0.0
    %251 = vmatprep.mubr.f32.mxu0 0.0
    %252 = vmatmul.mubr.f32.gmra.mrb[0].mxu0 %v169
    %v253 = vpop.f32.mrb[0].mxu0
    %v254 = vadd.f32 0.0, %v253
    %v255 = vpop.f32.mrb[0].mxu0
    %256 = vmatprep.mubr.f32.mxu0 0.0
    %257 = vmatmul.mubr.f32.gmra.mrb[0].mxu0 %v170
    %v258 = vpop.f32.mrb[0].mxu0
    %v259 = vadd.f32 0.0, %v258
    %v260 = vpop.f32.mrb[0].mxu0
    %261 = vdwg.mxu0
    %v262 = vmul.f32 %v254, 0.5
    %v263 = vmul.f32 %v259, 0.5
    %v264 = vtanh.pop %v262
    %v265 = vtanh.pop %v263
    %v266 = vmul.f32 %v264, 0.5
    %v267 = vmul.f32 %v265, 0.5
    %v268 = vadd.f32 %v266, 0.5
    %v269 = vadd.f32 %v267, 0.5
    %s270 = smul.u32 0, 128
    %s271 = sshra.s32 %s270, 7
    %s272 = sand.u32 %s270, 127
    %s273 = scalar_lea.vmem [#allocation2], %s271
    %v274 = vld [vmem:[%s273] sm:$0xff]
    %v275 = vld [vmem:[%s273 + $0x8] sm:$0xff]
    %v276 = vmul.f32 %v274, %v268
    %v277 = vmul.f32 %v275, %v269
    %v278 = vld [vmem:[#allocation3] sm:$0xff]
    %v279 = vld [vmem:[#allocation3 + $0x8] sm:$0xff]
    %v280 = vld [vmem:[#allocation10] sm:$0xff]
    %v281 = vld [vmem:[#allocation10 + $0x8] sm:$0xff]
    %v282 = vld [vmem:[#allocation10 + $0x10] sm:$0xff]
    %v283 = vld [vmem:[#allocation10 + $0x18] sm:$0xff]
    %v284 = vld [vmem:[#allocation10 + $0x20] sm:$0xff]
    %v285 = vld [vmem:[#allocation10 + $0x28] sm:$0xff]
    %v286 = vld [vmem:[#allocation10 + $0x30] sm:$0xff]
    %v287 = vld [vmem:[#allocation10 + $0x38] sm:$0xff]
    %v288 = vld [vmem:[#allocation10 + $0x40] sm:$0xff]
    %v289 = vld [vmem:[#allocation10 + $0x48] sm:$0xff]
    %v290 = vld [vmem:[#allocation10 + $0x50] sm:$0xff]
    %v291 = vld [vmem:[#allocation10 + $0x58] sm:$0xff]
    %v292 = vld [vmem:[#allocation10 + $0x60] sm:$0xff]
    %v293 = vld [vmem:[#allocation10 + $0x68] sm:$0xff]
    %v294 = vld [vmem:[#allocation10 + $0x70] sm:$0xff]
    %v295 = vld [vmem:[#allocation10 + $0x78] sm:$0xff]
    %296 = vmatprep.subr.mxu0 0.0
    %297 = vmatpush1.msra.mxu0 %v280
    %298 = vmatprep.subr.mxu0 0.0
    %299 = vmatpush1.msra.mxu0 %v281
    %300 = vmatprep.subr.mxu0 0.0
    %301 = vmatpush1.msra.mxu0 %v282
    %302 = vmatprep.subr.mxu0 0.0
    %303 = vmatpush1.msra.mxu0 %v283
    %304 = vmatprep.subr.mxu0 0.0
    %305 = vmatpush1.msra.mxu0 %v284
    %306 = vmatprep.subr.mxu0 0.0
    %307 = vmatpush1.msra.mxu0 %v285
    %308 = vmatprep.subr.mxu0 0.0
    %309 = vmatpush1.msra.mxu0 %v286
    %310 = vmatprep.subr.mxu0 0.0
    %311 = vmatpush1.msra.mxu0 %v287
    %312 = vmatprep.subr.mxu0 0.0
    %313 = vmatpush1.msra.mxu0 %v288
    %314 = vmatprep.subr.mxu0 0.0
    %315 = vmatpush1.msra.mxu0 %v289
    %316 = vmatprep.subr.mxu0 0.0
    %317 = vmatpush1.msra.mxu0 %v290
    %318 = vmatprep.subr.mxu0 0.0
    %319 = vmatpush1.msra.mxu0 %v291
    %320 = vmatprep.subr.mxu0 0.0
    %321 = vmatpush1.msra.mxu0 %v292
    %322 = vmatprep.subr.mxu0 0.0
    %323 = vmatpush1.msra.mxu0 %v293
    %324 = vmatprep.subr.mxu0 0.0
    %325 = vmatpush1.msra.mxu0 %v294
    %326 = vmatprep.subr.mxu0 0.0
    %327 = vmatpush1.msra.mxu0 %v295
    %328 = vmatprep.subr.mxu0 0.0
    %329 = vmatpush1.msra.mxu0 0.0
    %330 = vmatprep.subr.mxu0 0.0
    %331 = vmatpush1.msra.mxu0 0.0
    %332 = vmatprep.subr.mxu0 0.0
    %333 = vmatpush1.msra.mxu0 0.0
    %334 = vmatprep.subr.mxu0 0.0
    %335 = vmatpush1.msra.mxu0 0.0
    %336 = vmatprep.subr.mxu0 0.0
    %337 = vmatpush1.msra.mxu0 0.0
    %338 = vmatprep.subr.mxu0 0.0
    %339 = vmatpush1.msra.mxu0 0.0
    %340 = vmatprep.subr.mxu0 0.0
    %341 = vmatpush1.msra.mxu0 0.0
    %342 = vmatprep.subr.mxu0 0.0
    %343 = vmatpush1.msra.mxu0 0.0
    %344 = vmatprep.subr.mxu0 0.0
    %345 = vmatpush1.msra.mxu0 0.0
    %346 = vmatprep.subr.mxu0 0.0
    %347 = vmatpush1.msra.mxu0 0.0
    %348 = vmatprep.subr.mxu0 0.0
    %349 = vmatpush1.msra.mxu0 0.0
    %350 = vmatprep.subr.mxu0 0.0
    %351 = vmatpush1.msra.mxu0 0.0
    %352 = vmatprep.subr.mxu0 0.0
    %353 = vmatpush1.msra.mxu0 0.0
    %354 = vmatprep.subr.mxu0 0.0
    %355 = vmatpush1.msra.mxu0 0.0
    %356 = vmatprep.subr.mxu0 0.0
    %357 = vmatpush1.msra.mxu0 0.0
    %358 = vmatprep.subr.mxu0 0.0
    %359 = vmatpush1.msra.mxu0 0.0
    %360 = vmatprep.mubr.f32.mxu0 0.0
    %361 = vmatmul.mubr.f32.gmra.mrb[0].mxu0 %v276
    %v362 = vpop.f32.mrb[0].mxu0
    %v363 = vadd.f32 0.0, %v362
    %v364 = vpop.f32.mrb[0].mxu0
    %365 = vmatprep.mubr.f32.mxu0 0.0
    %366 = vmatmul.mubr.f32.gmra.mrb[0].mxu0 %v277
    %v367 = vpop.f32.mrb[0].mxu0
    %v368 = vadd.f32 0.0, %v367
    %v369 = vpop.f32.mrb[0].mxu0
    %370 = vdwg.mxu0
    %v371 = vadd.f32 %v278, %v363
    %v372 = vadd.f32 %v279, %v368
    %373 = vst [vmem:[#allocation3] sm:$0xff] %v371
    %374 = vst [vmem:[#allocation3 + $0x8] sm:$0xff] %v372
    // Predicated region
    $region38: #{tpu_custom_call.1} parent=1 // pred_check
      %p375 = pneg %p73
    $region39: #{tpu_custom_call.1} parent=1 // pred_check_branch
      %377 = sbr.rel (%p375) target = $region41
    $region40: #{tpu_custom_call.1} parent=1 // pred_region
      %v378 = vld [vmem:[#allocation3] sm:$0xff]
      %v379 = vld [vmem:[#allocation3 + $0x8] sm:$0xff]
      %380 = vst [vmem:[#allocation12] sm:$0xff] %v378
      %381 = vst [vmem:[#allocation12 + $0x8] sm:$0xff] %v379
    $region41: #{tpu_custom_call.1} parent=1 // pred_fallthru
      _
    // Predicated region
    $region42: #{tpu_custom_call.1} parent=1 // pred_check
      _
    $region43: #{tpu_custom_call.1} parent=1 // pred_check_branch
      %383 = sbr.rel (0) target = $region45
    $region44: #{tpu_custom_call.1} parent=1 // pred_region
      %s385 = ssub.s32 256, 256
      %386 = vsyncadd [#allocation6], %s385
      %s387 = sshll.u32 [#allocation12], 4
      %s388 = int_to_ptr.vmem [resolvable:$true] %s387
      %393 = dma.vmem_to_hbm [thread:$0]  %s388, 256, %s4, [#allocation6], 128, 128, 8
    $region45: #{tpu_custom_call.1} parent=1 // pred_fallthru
      _
    // Predicated region
    $region46: #{tpu_custom_call.1} parent=1 // pred_check
      _
    $region47: #{tpu_custom_call.1} parent=1 // pred_check_branch
      %395 = sbr.rel (0) target = $region49
    $region48: #{tpu_custom_call.1} parent=1 // pred_region
      %396 = dma.done [#allocation6], 256
    $region49: #{tpu_custom_call.1} parent=1 // pred_fallthru
      _
    %397 = vsyncpa [#allocation5], 1
    %398 = vsyncpa [#allocation8], 1
    %399 = vsyncpa [#allocation11], 1
    %400 = vsyncpa [#allocation6], 1

</llo_original>
